<compile_context>
chip_gen: v5e
topology: v5e:2x2
jax: 0.10.0
libtpu: 0.0.40
codegen_flags: <defaults>
</compile_context>

<pallas_src>
import functools

import jax
import jax.numpy as jnp
from jax.experimental import pallas as pl
from jax.experimental.pallas import tpu as pltpu


def conv_relu_stats_kernel(patches_ref, w_ref, b_ref, y_ref, stats_ref):
    """Per M-tile: conv (im2col matmul) + bias + ReLU, plus per-tile BN partial stats.

    patches_ref: [TM, K]    bf16
    w_ref:       [K, Cpad]  bf16
    b_ref:       [1, Cpad]  f32
    y_ref:       [TM, Cpad] f32   (pre-BN activation tile, written back for phase 2)
    stats_ref:   [2, Cpad]  f32   (row 0: sum over the TM rows, row 1: sum of squares)
    """
    # Conv as matmul on the MXU (bf16 operands, f32 accumulate).
    y = jnp.dot(patches_ref[...], w_ref[...], preferred_element_type=jnp.float32)
    y = jnp.maximum(y + b_ref[...], 0.0)                      # bias + ReLU
    y_ref[...] = y
    # Single-pass partial statistics for BatchNorm (train-mode batch stats).
    s = jnp.sum(y, axis=0, keepdims=True)                     # [1, Cpad]
    sq = jnp.sum(y * y, axis=0, keepdims=True)                # [1, Cpad]
    stats_ref[...] = jnp.concatenate([s, sq], axis=0)


def bn_apply_kernel(y_ref, scale_ref, shift_ref, out_ref):
    """Folded BN epilogue: out = y * scale + shift (per-channel scale/shift)."""
    out_ref[...] = (y_ref[...] * scale_ref[...] + shift_ref[...]).astype(out_ref.dtype)


def _pick_tile_m(m):
    # Prefer big tiles but keep >= 2 grid steps so pipelining / v7x megacore have work;
    # the tile must divide m exactly (no M padding -> BN stats stay exact).
    for t in (1024, 512, 256, 128, 64, 32, 16, 8):
        if t * 2 <= m and m % t == 0:
            return t
    return m


def conv_block(x_nchw, w_oihw, bias, gamma, beta, *, padding=(1, 1), stride=1):
    """ConvBlock forward. x_nchw: [N, Cin, H, W]; w_oihw: [Cout, Cin, KH, KW]."""
    N, Cin, H, W = x_nchw.shape
    Cout, _, KH, KW = w_oihw.shape
    ph, pw = padding

    # ---- glue: im2col in plain JAX ----
    # TODO(synk): for large feature maps im2col duplicates the input KH*KW times in HBM;
    # the scalable variant streams the padded NHWC input and loops over taps in-kernel.
    x = jnp.transpose(x_nchw, (0, 2, 3, 1))                        # NHWC
    xp = jnp.pad(x, ((0, 0), (ph, ph), (pw, pw), (0, 0)))
    Hout = (H + 2 * ph - KH) // stride + 1
    Wout = (W + 2 * pw - KW) // stride + 1
    pats = []
    for i in range(KH):
        for j in range(KW):
            pats.append(xp[:, i:i + stride * Hout:stride, j:j + stride * Wout:stride, :])
    patches = jnp.stack(pats, axis=3).reshape(N * Hout * Wout, KH * KW * Cin)
    patches = patches.astype(jnp.bfloat16)                         # bf16 MXU operand

    M, K = patches.shape

    # ---- pad Cout to a lane-dense multiple of 128 (zero columns, sliced off later) ----
    Cpad = ((Cout + 127) // 128) * 128
    pad_c = Cpad - Cout
    wmat = jnp.transpose(w_oihw, (2, 3, 1, 0)).reshape(K, Cout)
    wmat = jnp.pad(wmat, ((0, 0), (0, pad_c))).astype(jnp.bfloat16)
    b_p = jnp.pad(bias.astype(jnp.float32), (0, pad_c)).reshape(1, Cpad)
    g_p = jnp.pad(gamma.astype(jnp.float32), (0, pad_c))
    be_p = jnp.pad(beta.astype(jnp.float32), (0, pad_c))

    TM = _pick_tile_m(M)
    num_tiles = M // TM

    # ---- phase 1: conv + bias + ReLU + per-tile partial BN stats (M-tiled, parallel) ----
    y, stats = pl.pallas_call(
        conv_relu_stats_kernel,
        out_shape=(
            jax.ShapeDtypeStruct((M, Cpad), jnp.float32),
            jax.ShapeDtypeStruct((num_tiles, 2, Cpad), jnp.float32),
        ),
        grid=(num_tiles,),
        in_specs=[
            pl.BlockSpec((TM, K), lambda i: (i, 0)),
            pl.BlockSpec((K, Cpad), lambda i: (0, 0)),
            pl.BlockSpec((1, Cpad), lambda i: (0, 0)),
        ],
        out_specs=(
            pl.BlockSpec((TM, Cpad), lambda i: (i, 0)),
            pl.BlockSpec((None, 2, Cpad), lambda i: (i, 0, 0)),
        ),
        compiler_params=pltpu.CompilerParams(dimension_semantics=("parallel",)),
    )(patches, wmat, b_p)

    # ---- tiny cross-tile reduction + folded BN scale/shift (train-mode batch stats) ----
    sums = jnp.sum(stats[:, 0, :], axis=0)                         # [Cpad]
    sumsq = jnp.sum(stats[:, 1, :], axis=0)                        # [Cpad]
    mean = sums / M
    var = jnp.maximum(sumsq / M - mean * mean, 0.0)                # biased var; clamp >= 0
    scale = g_p * jax.lax.rsqrt(var + 1e-5)                        # eps = PyTorch default
    shift = be_p - mean * scale
    # TODO(synk): nn.BatchNorm2d.train() also updates running_mean/running_var
    # (momentum, unbiased var); that side effect is not produced here.

    # ---- phase 2: apply folded BN: out = y * scale + shift (M-tiled, parallel) ----
    out = pl.pallas_call(
        bn_apply_kernel,
        out_shape=jax.ShapeDtypeStruct((M, Cpad), jnp.float32),
        grid=(num_tiles,),
        in_specs=[
            pl.BlockSpec((TM, Cpad), lambda i: (i, 0)),
            pl.BlockSpec((1, Cpad), lambda i: (0, 0)),
            pl.BlockSpec((1, Cpad), lambda i: (0, 0)),
        ],
        out_specs=pl.BlockSpec((TM, Cpad), lambda i: (i, 0)),
        compiler_params=pltpu.CompilerParams(dimension_semantics=("parallel",)),
    )(y, scale.reshape(1, Cpad), shift.reshape(1, Cpad))

    # slice off padded channels, back to NCHW
    out = out[:, :Cout].reshape(N, Hout, Wout, Cout)
    return jnp.transpose(out, (0, 3, 1, 2))


if __name__ == "__main__":
    # Small shapes consistent with the module: batch=2, in_channels=4, spatial=16x16,
    # out_channels=8, kernel_size=3, padding=(1,1), stride=1, use_dw=False.
    N, Cin, H, W = 2, 4, 16, 16
    Cout, KH, KW = 8, 3, 3

    key = jax.random.PRNGKey(0)
    k_x, k_w, k_b = jax.random.split(key, 3)

    x = jax.random.normal(k_x, (N, Cin, H, W), dtype=jnp.float32)

    # Deterministic parameter init (synthetic; mimics PyTorch uniform fan-in scale).
    fan_in = Cin * KH * KW
    bound = 1.0 / (fan_in ** 0.5)
    w = jax.random.uniform(k_w, (Cout, Cin, KH, KW), minval=-bound, maxval=bound,
                           dtype=jnp.float32)
    b = jax.random.uniform(k_b, (Cout,), minval=-bound, maxval=bound, dtype=jnp.float32)
    gamma = jnp.ones((Cout,), dtype=jnp.float32)   # BatchNorm2d.weight init
    beta = jnp.zeros((Cout,), dtype=jnp.float32)   # BatchNorm2d.bias init

    fwd = jax.jit(functools.partial(conv_block, padding=(1, 1), stride=1))
    out = jax.block_until_ready(fwd(x, w, b, gamma, beta))

    assert out.shape == (N, Cout, H, W), out.shape
    assert bool(jnp.all(jnp.isfinite(out)))
    print("KERNEL_OK")
</pallas_src>

<mosaic_0001>
module attributes {stable_mosaic.version = 11 : i64} {
  func.func @conv_relu_stats_kernel(%arg0: i32, %arg1: memref<256x36xbf16, #tpu.memory_space<vmem>>, %arg2: memref<36x128xbf16, #tpu.memory_space<vmem>>, %arg3: memref<1x128xf32, #tpu.memory_space<vmem>>, %arg4: memref<256x128xf32, #tpu.memory_space<vmem>>, %arg5: memref<1x2x128xf32, #tpu.memory_space<vmem>>) attributes {dimension_semantics = [#tpu.dimension_semantics<parallel>], iteration_bounds = array<i64: 2>, scalar_prefetch = 0 : i64, scratch_operands = 0 : i64, tpu.core_type = #tpu.core_type<tc>, window_params = [{transform_indices = @transform_0, window_bounds = array<i64: 256, 36>}, {pipeline_mode = #tpu.pipeline_mode<synchronous>, transform_indices = @transform_1, window_bounds = array<i64: 36, 128>}, {pipeline_mode = #tpu.pipeline_mode<synchronous>, transform_indices = @transform_2, window_bounds = array<i64: 1, 128>}, {transform_indices = @transform_3, window_bounds = array<i64: 256, 128>}, {transform_indices = @transform_4, window_bounds = array<i64: 1, 2, 128>}]} {
    %c0 = arith.constant 0 : index
    %c0_0 = arith.constant 0 : index
    %0 = vector.load %arg1[%c0, %c0_0] : memref<256x36xbf16, #tpu.memory_space<vmem>>, vector<256x36xbf16>
    %c0_1 = arith.constant 0 : index
    %c0_2 = arith.constant 0 : index
    %1 = vector.load %arg2[%c0_1, %c0_2] : memref<36x128xbf16, #tpu.memory_space<vmem>>, vector<36x128xbf16>
    %cst = arith.constant dense<0.000000e+00> : vector<256x128xf32>
    %2 = tpu.matmul %0, %1, %cst {dimension_numbers = #tpu.dot_dimension_numbers<[1], [0], [0], [1], [0, 0, 1, 1], [], []>} : vector<256x36xbf16>, vector<36x128xbf16>, vector<256x128xf32> -> vector<256x128xf32>
    %c0_3 = arith.constant 0 : index
    %c0_4 = arith.constant 0 : index
    %3 = vector.load %arg3[%c0_3, %c0_4] : memref<1x128xf32, #tpu.memory_space<vmem>>, vector<1x128xf32>
    %4 = vector.broadcast %3 : vector<1x128xf32> to vector<256x128xf32>
    %5 = arith.addf %2, %4 : vector<256x128xf32>
    %cst_5 = arith.constant 0.000000e+00 : f32
    %6 = vector.broadcast %cst_5 : f32 to vector<256x128xf32>
    %7 = arith.maximumf %5, %6 : vector<256x128xf32>
    %c0_6 = arith.constant 0 : index
    %c0_7 = arith.constant 0 : index
    %8 = vector.load %arg4[%c0_6, %c0_7] : memref<256x128xf32, #tpu.memory_space<vmem>>, vector<256x128xf32>
    tpu.vector_store %arg4[%c0_6, %c0_7], %7 {strides = array<i32>} : memref<256x128xf32, #tpu.memory_space<vmem>>, vector<256x128xf32>,
    %cst_8 = arith.constant dense<0.000000e+00> : vector<128xf32>
    %9 = vector.multi_reduction <add>, %7, %cst_8 [0] : vector<256x128xf32> to vector<128xf32>
    %10 = vector.shape_cast %9 : vector<128xf32> to vector<1x128xf32>
    %11 = arith.mulf %7, %7 : vector<256x128xf32>
    %cst_9 = arith.constant dense<0.000000e+00> : vector<128xf32>
    %12 = vector.multi_reduction <add>, %11, %cst_9 [0] : vector<256x128xf32> to vector<128xf32>
    %13 = vector.shape_cast %12 : vector<128xf32> to vector<1x128xf32>
    %14 = tpu.concatenate %10, %13 in 0 : vector<1x128xf32>, vector<1x128xf32> -> vector<2x128xf32>
    %c0_10 = arith.constant 0 : index
    %c0_11 = arith.constant 0 : index
    %c0_12 = arith.constant 0 : index
    %15 = vector.load %arg5[%c0_10, %c0_11, %c0_12] : memref<1x2x128xf32, #tpu.memory_space<vmem>>, vector<1x2x128xf32>
    %16 = vector.shape_cast %15 : vector<1x2x128xf32> to vector<2x128xf32>
    %17 = vector.shape_cast %14 : vector<2x128xf32> to vector<1x2x128xf32>
    tpu.vector_store %arg5[%c0_10, %c0_11, %c0_12], %17 {strides = array<i32>} : memref<1x2x128xf32, #tpu.memory_space<vmem>>, vector<1x2x128xf32>,
    return
  }
  func.func @transform_0(%arg0: i32) -> (i32, i32) {
    %c0_i32 = arith.constant 0 : i32
    %c0_i32_0 = arith.constant 0 : i32
    return %arg0, %c0_i32 : i32, i32
  }
  func.func @transform_1(%arg0: i32) -> (i32, i32) {
    %c0_i32 = arith.constant 0 : i32
    %c0_i32_0 = arith.constant 0 : i32
    %c0_i32_1 = arith.constant 0 : i32
    return %c0_i32, %c0_i32_0 : i32, i32
  }
  func.func @transform_2(%arg0: i32) -> (i32, i32) {
    %c0_i32 = arith.constant 0 : i32
    %c0_i32_0 = arith.constant 0 : i32
    %c0_i32_1 = arith.constant 0 : i32
    return %c0_i32, %c0_i32_0 : i32, i32
  }
  func.func @transform_3(%arg0: i32) -> (i32, i32) {
    %c0_i32 = arith.constant 0 : i32
    %c0_i32_0 = arith.constant 0 : i32
    return %arg0, %c0_i32 : i32, i32
  }
  func.func @transform_4(%arg0: i32) -> (i32, i32, i32) {
    %c0_i32 = arith.constant 0 : i32
    %c0_i32_0 = arith.constant 0 : i32
    %c0_i32_1 = arith.constant 0 : i32
    return %arg0, %c0_i32, %c0_i32_0 : i32, i32, i32
  }
}

module attributes {stable_mosaic.version = 11 : i64} {
  func.func @bn_apply_kernel(%arg0: i32, %arg1: memref<256x128xf32, #tpu.memory_space<vmem>>, %arg2: memref<1x128xf32, #tpu.memory_space<vmem>>, %arg3: memref<1x128xf32, #tpu.memory_space<vmem>>, %arg4: memref<256x128xf32, #tpu.memory_space<vmem>>) attributes {dimension_semantics = [#tpu.dimension_semantics<parallel>], iteration_bounds = array<i64: 2>, scalar_prefetch = 0 : i64, scratch_operands = 0 : i64, tpu.core_type = #tpu.core_type<tc>, window_params = [{transform_indices = @transform_0, window_bounds = array<i64: 256, 128>}, {pipeline_mode = #tpu.pipeline_mode<synchronous>, transform_indices = @transform_1, window_bounds = array<i64: 1, 128>}, {pipeline_mode = #tpu.pipeline_mode<synchronous>, transform_indices = @transform_2, window_bounds = array<i64: 1, 128>}, {transform_indices = @transform_3, window_bounds = array<i64: 256, 128>}]} {
    %c0 = arith.constant 0 : index
    %c0_0 = arith.constant 0 : index
    %0 = vector.load %arg1[%c0, %c0_0] : memref<256x128xf32, #tpu.memory_space<vmem>>, vector<256x128xf32>
    %c0_1 = arith.constant 0 : index
    %c0_2 = arith.constant 0 : index
    %1 = vector.load %arg2[%c0_1, %c0_2] : memref<1x128xf32, #tpu.memory_space<vmem>>, vector<1x128xf32>
    %2 = vector.broadcast %1 : vector<1x128xf32> to vector<256x128xf32>
    %3 = arith.mulf %0, %2 : vector<256x128xf32>
    %c0_3 = arith.constant 0 : index
    %c0_4 = arith.constant 0 : index
    %4 = vector.load %arg3[%c0_3, %c0_4] : memref<1x128xf32, #tpu.memory_space<vmem>>, vector<1x128xf32>
    %5 = vector.broadcast %4 : vector<1x128xf32> to vector<256x128xf32>
    %6 = arith.addf %3, %5 : vector<256x128xf32>
    %c0_5 = arith.constant 0 : index
    %c0_6 = arith.constant 0 : index
    %7 = vector.load %arg4[%c0_5, %c0_6] : memref<256x128xf32, #tpu.memory_space<vmem>>, vector<256x128xf32>
    tpu.vector_store %arg4[%c0_5, %c0_6], %6 {strides = array<i32>} : memref<256x128xf32, #tpu.memory_space<vmem>>, vector<256x128xf32>,
    return
  }
  func.func @transform_0(%arg0: i32) -> (i32, i32) {
    %c0_i32 = arith.constant 0 : i32
    %c0_i32_0 = arith.constant 0 : i32
    return %arg0, %c0_i32 : i32, i32
  }
  func.func @transform_1(%arg0: i32) -> (i32, i32) {
    %c0_i32 = arith.constant 0 : i32
    %c0_i32_0 = arith.constant 0 : i32
    %c0_i32_1 = arith.constant 0 : i32
    return %c0_i32, %c0_i32_0 : i32, i32
  }
  func.func @transform_2(%arg0: i32) -> (i32, i32) {
    %c0_i32 = arith.constant 0 : i32
    %c0_i32_0 = arith.constant 0 : i32
    %c0_i32_1 = arith.constant 0 : i32
    return %c0_i32, %c0_i32_0 : i32, i32
  }
  func.func @transform_3(%arg0: i32) -> (i32, i32) {
    %c0_i32 = arith.constant 0 : i32
    %c0_i32_0 = arith.constant 0 : i32
    return %arg0, %c0_i32 : i32, i32
  }
}

</mosaic_0001>

<llo_original>
// kernel: conv_block.3
$region0: #{conv_block.3}
  #allocation0 [shape = 'u32[]', space=smem, size = 0x4, offset = 0x4, fixed_abs, tag = 'smem constant byte address 0x4 - core index']
  #allocation1 [shape = 'u32[72,128]{1,0:T(1,128)}', space=vmem, size = 0x9000, scoped, tag = 'internal scratch']
  %s0 = inlined_call_operand.vmem [shape: f32[512,128], index: 0, kind: input, shape index: {}]
  %s1 = inlined_call_operand.vmem [shape: f32[1,128], index: 1, kind: input, shape index: {}]
  %s2 = inlined_call_operand.vmem [shape: f32[1,128], index: 2, kind: input, shape index: {}]
  %s3 = inlined_call_operand.vmem [shape: f32[512,128], index: 3, kind: output, shape index: {}]
  %s4 = sld [smem:[#allocation0]]
  $region45: #{conv_block.3} parent=0
    _
  %s6 = ssub.s32 1, %s4
  %s7 = scalar_select 0, %s6, %s4
  loop: start=0, step=1, limit=4
  $region2: #{conv_block.3} parent=0 // loop_pre_header
    _
  $region3: #{conv_block.3} parent=0 // loop_header
    %s9 = sphi 0, %s13
    %p10 = scmp.ge.s32.totalorder %s9, 4
    %s19 = sphi 0, %s21
    %s22 = sphi 0, %s19
    %s23 = sphi 0, %s22
    %s39 = sphi 0, %s23
    %s43 = sphi 0, %s43
    %s45 = sphi 0, %s43
    %s46 = sphi 0, %s45
    %s60 = sphi 0, %s46
    %s64 = sphi 0, %s64
    %s66 = sphi 0, %s64
    %s67 = sphi 0, %s66
    %s81 = sphi 0, %s67
    %s87 = sphi 0, %s89
    %s90 = sphi 0, %s87
    %s91 = sphi 0, %s90
    %s107 = sphi 0, %s91
  $region4: #{conv_block.3} parent=0 // loop_header_branch
    %12 = sbr.rel (%p10) target = $region8
  $region5: #{conv_block.3} parent=0 // loop_body
    %s14 = ssub.s32 %s9, 1
    %s15 = ssub.s32 %s9, 2
    %s16 = sadd.s32 %s9, 1
    %s17 = ssub.s32 %s9, %s16
    %p18 = scmp.eq.s32.totalorder %s17, 0
    %s20 = sadd.s32 %s19, 1
    %s21 = scalar_select %p18, %s19, %s20
    %p24 = pneg %p18
    %p25 = scmp.eq.s32.totalorder %s9, 1
    %p26 = por %p24, %p25
    %p27 = scmp.ne.s32.totalorder %s19, %s22
    %p28 = scmp.eq.s32.totalorder %s9, 0
    %p29 = por %p27, %p28
    %p30 = scmp.ne.s32.totalorder %s19, %s22
    %p31 = scmp.eq.s32.totalorder %s14, 1
    %p32 = por %p30, %p31
    %p33 = scmp.ne.s32.totalorder %s22, %s23
    %p34 = scmp.eq.s32.totalorder %s14, 0
    %p35 = por %p33, %p34
    %p36 = scmp.ne.s32.totalorder %s22, %s23
    %p37 = scmp.eq.s32.totalorder %s15, 1
    %p38 = por %p36, %p37
    %p40 = scmp.ne.s32.totalorder %s23, %s39
    %p41 = scmp.eq.s32.totalorder %s15, 0
    %p42 = por %p40, %p41
    %s44 = sadd.s32 %s43, 1
    %p47 = scmp.eq.s32.totalorder %s9, 1
    %p48 = scmp.ne.s32.totalorder %s43, %s45
    %p49 = scmp.eq.s32.totalorder %s9, 0
    %p50 = por %p48, %p49
    %p51 = scmp.ne.s32.totalorder %s43, %s45
    %p52 = scmp.eq.s32.totalorder %s14, 1
    %p53 = por %p51, %p52
    %p54 = scmp.ne.s32.totalorder %s45, %s46
    %p55 = scmp.eq.s32.totalorder %s14, 0
    %p56 = por %p54, %p55
    %p57 = scmp.ne.s32.totalorder %s45, %s46
    %p58 = scmp.eq.s32.totalorder %s15, 1
    %p59 = por %p57, %p58
    %p61 = scmp.ne.s32.totalorder %s46, %s60
    %p62 = scmp.eq.s32.totalorder %s15, 0
    %p63 = por %p61, %p62
    %s65 = sadd.s32 %s64, 1
    %p68 = scmp.eq.s32.totalorder %s9, 1
    %p69 = scmp.ne.s32.totalorder %s64, %s66
    %p70 = scmp.eq.s32.totalorder %s9, 0
    %p71 = por %p69, %p70
    %p72 = scmp.ne.s32.totalorder %s64, %s66
    %p73 = scmp.eq.s32.totalorder %s14, 1
    %p74 = por %p72, %p73
    %p75 = scmp.ne.s32.totalorder %s66, %s67
    %p76 = scmp.eq.s32.totalorder %s14, 0
    %p77 = por %p75, %p76
    %p78 = scmp.ne.s32.totalorder %s66, %s67
    %p79 = scmp.eq.s32.totalorder %s15, 1
    %p80 = por %p78, %p79
    %p82 = scmp.ne.s32.totalorder %s67, %s81
    %p83 = scmp.eq.s32.totalorder %s15, 0
    %p84 = por %p82, %p83
    %s85 = ssub.s32 %s9, %s16
    %p86 = scmp.eq.s32.totalorder %s85, 0
    %s88 = sadd.s32 %s87, 1
    %s89 = scalar_select %p86, %s87, %s88
    %p92 = pneg %p86
    %p93 = scmp.eq.s32.totalorder %s9, 1
    %p94 = por %p92, %p93
    %p95 = scmp.ne.s32.totalorder %s87, %s90
    %p96 = scmp.eq.s32.totalorder %s9, 0
    %p97 = por %p95, %p96
    %p98 = scmp.ne.s32.totalorder %s87, %s90
    %p99 = scmp.eq.s32.totalorder %s14, 1
    %p100 = por %p98, %p99
    %p101 = scmp.ne.s32.totalorder %s90, %s91
    %p102 = scmp.eq.s32.totalorder %s14, 0
    %p103 = por %p101, %p102
    %p104 = scmp.ne.s32.totalorder %s90, %s91
    %p105 = scmp.eq.s32.totalorder %s15, 1
    %p106 = por %p104, %p105
    %p108 = scmp.ne.s32.totalorder %s91, %s107
    %p109 = scmp.eq.s32.totalorder %s15, 0
    %p110 = por %p108, %p109
    %p111 = scmp.le.s32.totalorder 1, %s9
    %p112 = scmp.lt.s32.totalorder %s9, 3
    %p113 = pnand %p111, %p112
    %p114 = pneg %p113
    // Predicated region
    $region9: #{conv_block.3} parent=5 // pred_check
      _
    $region10: #{conv_block.3} parent=5 // pred_check_branch
      %116 = sbr.rel (%p113) target = $region12
    $region11: #{conv_block.3} parent=5 // pred_region
      %s117 = ssub.s32 %s9, 1
      // Predicated region
      $region13: #{conv_block.3} parent=11 // pred_check
        %p118 = pneg %p56
      $region14: #{conv_block.3} parent=11 // pred_check_branch
        %120 = sbr.rel (%p118) target = $region16
      $region15: #{conv_block.3} parent=11 // pred_region
        _
      $region16: #{conv_block.3} parent=11 // pred_fallthru
        _
      // Predicated region
      $region17: #{conv_block.3} parent=11 // pred_check
        %p121 = pneg %p77
      $region18: #{conv_block.3} parent=11 // pred_check_branch
        %123 = sbr.rel (%p121) target = $region20
      $region19: #{conv_block.3} parent=11 // pred_region
        _
      $region20: #{conv_block.3} parent=11 // pred_fallthru
        _
    $region12: #{conv_block.3} parent=5 // pred_fallthru
      _
    %p124 = scmp.lt.s32.totalorder %s9, 2
    // Predicated region
    $region21: #{conv_block.3} parent=5 // pred_check
      %p125 = pneg %p124
    $region22: #{conv_block.3} parent=5 // pred_check_branch
      %127 = sbr.rel (%p125) target = $region24
    $region23: #{conv_block.3} parent=5 // pred_region
      // Predicated region
      $region25: #{conv_block.3} parent=23 // pred_check
        %p128 = pneg %p29
      $region26: #{conv_block.3} parent=23 // pred_check_branch
        %130 = sbr.rel (%p128) target = $region28
      $region27: #{conv_block.3} parent=23 // pred_region
        %s131 = smul.u32 32, %s9
        %p132 = scmp.lt.s32.totalorder %s131, 63
        %s133 = scalar_select %p132, %s131, 63
        %s134 = smul.addr %s133, 8
        %s135 = scalar_lea.vmem %s0, %s134
        %s136 = smul.u32 32, %s9
      $region28: #{conv_block.3} parent=23 // pred_fallthru
        _
    $region24: #{conv_block.3} parent=5 // pred_fallthru
      _
    %p137 = scmp.le.s32.totalorder 1, %s9
    %p138 = scmp.lt.s32.totalorder %s9, 3
    %p139 = pnand %p137, %p138
    %p140 = pneg %p139
    // Predicated region
    $region29: #{conv_block.3} parent=5 // pred_check
      _
    $region30: #{conv_block.3} parent=5 // pred_check_branch
      %142 = sbr.rel (%p139) target = $region32
    $region31: #{conv_block.3} parent=5 // pred_region
      %s143 = ssub.s32 %s9, 1
      %s144 = smul.u32 32, %s14
      %p145 = scmp.lt.s32.totalorder %s144, 63
      %s146 = scalar_select %p145, %s144, 63
      %s147 = smul.addr %s146, 8
      %s148 = scalar_lea.vmem %s0, %s147
      %p149 = pneg %p35
      %p150 = pneg %p32
      %p151 = pneg %p56
      %p152 = pneg %p53
      %p153 = pneg %p77
      %p154 = pneg %p74
      %p155 = pneg %p103
      %p156 = pneg %p100
      %s157 = smul.u32 32, %s14
      %p158 = scmp.lt.s32.totalorder %s157, 63
      %s159 = scalar_select %p158, %s157, 63
      %s160 = smul.addr %s159, 8
      %s161 = scalar_lea.vmem %s3, %s160
      %s162 = smul.u32 32, %s14
      %p163 = scmp.lt.s32.totalorder %s162, 63
      %s164 = scalar_select %p163, %s162, 63
      %s165 = smul.addr %s164, 8
      %s166 = scalar_lea.vmem %s0, %s165
      %s167 = smul.u32 32, %s14
      %s168 = smul.u32 32, %s14
      %p169 = scmp.lt.s32.totalorder %s168, 63
      %s170 = scalar_select %p169, %s168, 63
      %s171 = smul.addr %s170, 8
      %s172 = scalar_lea.vmem %s3, %s171
      %s173 = smul.u32 32, %s14
      %v174 = vld [vmem:[%s166] sm:$0xff]
      %v175 = vld [vmem:[%s166 + $0x8] sm:$0xff]
      %v176 = vld [vmem:[%s166 + $0x10] sm:$0xff]
      %v177 = vld [vmem:[%s166 + $0x18] sm:$0xff]
      %v178 = vld [vmem:[%s166 + $0x20] sm:$0xff]
      %v179 = vld [vmem:[%s166 + $0x28] sm:$0xff]
      %v180 = vld [vmem:[%s166 + $0x30] sm:$0xff]
      %v181 = vld [vmem:[%s166 + $0x38] sm:$0xff]
      %v182 = vld [vmem:[%s166 + $0x40] sm:$0xff]
      %v183 = vld [vmem:[%s166 + $0x48] sm:$0xff]
      %v184 = vld [vmem:[%s166 + $0x50] sm:$0xff]
      %v185 = vld [vmem:[%s166 + $0x58] sm:$0xff]
      %v186 = vld [vmem:[%s166 + $0x60] sm:$0xff]
      %v187 = vld [vmem:[%s166 + $0x68] sm:$0xff]
      %v188 = vld [vmem:[%s166 + $0x70] sm:$0xff]
      %v189 = vld [vmem:[%s166 + $0x78] sm:$0xff]
      %v190 = vld [vmem:[%s166 + $0x80] sm:$0xff]
      %v191 = vld [vmem:[%s166 + $0x88] sm:$0xff]
      %v192 = vld [vmem:[%s166 + $0x90] sm:$0xff]
      %v193 = vld [vmem:[%s166 + $0x98] sm:$0xff]
      %v194 = vld [vmem:[%s166 + $0xa0] sm:$0xff]
      %v195 = vld [vmem:[%s166 + $0xa8] sm:$0xff]
      %v196 = vld [vmem:[%s166 + $0xb0] sm:$0xff]
      %v197 = vld [vmem:[%s166 + $0xb8] sm:$0xff]
      %v198 = vld [vmem:[%s166 + $0xc0] sm:$0xff]
      %v199 = vld [vmem:[%s166 + $0xc8] sm:$0xff]
      %v200 = vld [vmem:[%s166 + $0xd0] sm:$0xff]
      %v201 = vld [vmem:[%s166 + $0xd8] sm:$0xff]
      %v202 = vld [vmem:[%s166 + $0xe0] sm:$0xff]
      %v203 = vld [vmem:[%s166 + $0xe8] sm:$0xff]
      %v204 = vld [vmem:[%s166 + $0xf0] sm:$0xff]
      %v205 = vld [vmem:[%s166 + $0xf8] sm:$0xff]
      %v206 = vld [vmem:[%s1] sm:$0x1]
      %v208 = vperm.slane %v206, 0
      %v210 = vmul.f32 %v174, %v208
      %v211 = vmul.f32 %v175, %v208
      %v212 = vmul.f32 %v176, %v208
      %v213 = vmul.f32 %v177, %v208
      %v214 = vmul.f32 %v178, %v208
      %v215 = vmul.f32 %v179, %v208
      %v216 = vmul.f32 %v180, %v208
      %v217 = vmul.f32 %v181, %v208
      %v218 = vmul.f32 %v182, %v208
      %v219 = vmul.f32 %v183, %v208
      %v220 = vmul.f32 %v184, %v208
      %v221 = vmul.f32 %v185, %v208
      %v222 = vmul.f32 %v186, %v208
      %v223 = vmul.f32 %v187, %v208
      %v224 = vmul.f32 %v188, %v208
      %v225 = vmul.f32 %v189, %v208
      %v226 = vmul.f32 %v190, %v208
      %v227 = vmul.f32 %v191, %v208
      %v228 = vmul.f32 %v192, %v208
      %v229 = vmul.f32 %v193, %v208
      %v230 = vmul.f32 %v194, %v208
      %v231 = vmul.f32 %v195, %v208
      %v232 = vmul.f32 %v196, %v208
      %v233 = vmul.f32 %v197, %v208
      %v234 = vmul.f32 %v198, %v208
      %v235 = vmul.f32 %v199, %v208
      %v236 = vmul.f32 %v200, %v208
      %v237 = vmul.f32 %v201, %v208
      %v238 = vmul.f32 %v202, %v208
      %v239 = vmul.f32 %v203, %v208
      %v240 = vmul.f32 %v204, %v208
      %v241 = vmul.f32 %v205, %v208
      %v242 = vld [vmem:[%s2] sm:$0x1]
      %v244 = vperm.slane %v242, 0
      %v246 = vadd.f32 %v210, %v244
      %v247 = vadd.f32 %v211, %v244
      %v248 = vadd.f32 %v212, %v244
      %v249 = vadd.f32 %v213, %v244
      %v250 = vadd.f32 %v214, %v244
      %v251 = vadd.f32 %v215, %v244
      %v252 = vadd.f32 %v216, %v244
      %v253 = vadd.f32 %v217, %v244
      %v254 = vadd.f32 %v218, %v244
      %v255 = vadd.f32 %v219, %v244
      %v256 = vadd.f32 %v220, %v244
      %v257 = vadd.f32 %v221, %v244
      %v258 = vadd.f32 %v222, %v244
      %v259 = vadd.f32 %v223, %v244
      %v260 = vadd.f32 %v224, %v244
      %v261 = vadd.f32 %v225, %v244
      %v262 = vadd.f32 %v226, %v244
      %v263 = vadd.f32 %v227, %v244
      %v264 = vadd.f32 %v228, %v244
      %v265 = vadd.f32 %v229, %v244
      %v266 = vadd.f32 %v230, %v244
      %v267 = vadd.f32 %v231, %v244
      %v268 = vadd.f32 %v232, %v244
      %v269 = vadd.f32 %v233, %v244
      %v270 = vadd.f32 %v234, %v244
      %v271 = vadd.f32 %v235, %v244
      %v272 = vadd.f32 %v236, %v244
      %v273 = vadd.f32 %v237, %v244
      %v274 = vadd.f32 %v238, %v244
      %v275 = vadd.f32 %v239, %v244
      %v276 = vadd.f32 %v240, %v244
      %v277 = vadd.f32 %v241, %v244
      %278 = vst [vmem:[%s172] sm:$0xff] %v246
      %279 = vst [vmem:[%s172 + $0x8] sm:$0xff] %v247
      %280 = vst [vmem:[%s172 + $0x10] sm:$0xff] %v248
      %281 = vst [vmem:[%s172 + $0x18] sm:$0xff] %v249
      %282 = vst [vmem:[%s172 + $0x20] sm:$0xff] %v250
      %283 = vst [vmem:[%s172 + $0x28] sm:$0xff] %v251
      %284 = vst [vmem:[%s172 + $0x30] sm:$0xff] %v252
      %285 = vst [vmem:[%s172 + $0x38] sm:$0xff] %v253
      %286 = vst [vmem:[%s172 + $0x40] sm:$0xff] %v254
      %287 = vst [vmem:[%s172 + $0x48] sm:$0xff] %v255
      %288 = vst [vmem:[%s172 + $0x50] sm:$0xff] %v256
      %289 = vst [vmem:[%s172 + $0x58] sm:$0xff] %v257
      %290 = vst [vmem:[%s172 + $0x60] sm:$0xff] %v258
      %291 = vst [vmem:[%s172 + $0x68] sm:$0xff] %v259
      %292 = vst [vmem:[%s172 + $0x70] sm:$0xff] %v260
      %293 = vst [vmem:[%s172 + $0x78] sm:$0xff] %v261
      %294 = vst [vmem:[%s172 + $0x80] sm:$0xff] %v262
      %295 = vst [vmem:[%s172 + $0x88] sm:$0xff] %v263
      %296 = vst [vmem:[%s172 + $0x90] sm:$0xff] %v264
      %297 = vst [vmem:[%s172 + $0x98] sm:$0xff] %v265
      %298 = vst [vmem:[%s172 + $0xa0] sm:$0xff] %v266
      %299 = vst [vmem:[%s172 + $0xa8] sm:$0xff] %v267
      %300 = vst [vmem:[%s172 + $0xb0] sm:$0xff] %v268
      %301 = vst [vmem:[%s172 + $0xb8] sm:$0xff] %v269
      %302 = vst [vmem:[%s172 + $0xc0] sm:$0xff] %v270
      %303 = vst [vmem:[%s172 + $0xc8] sm:$0xff] %v271
      %304 = vst [vmem:[%s172 + $0xd0] sm:$0xff] %v272
      %305 = vst [vmem:[%s172 + $0xd8] sm:$0xff] %v273
      %306 = vst [vmem:[%s172 + $0xe0] sm:$0xff] %v274
      %307 = vst [vmem:[%s172 + $0xe8] sm:$0xff] %v275
      %308 = vst [vmem:[%s172 + $0xf0] sm:$0xff] %v276
      %309 = vst [vmem:[%s172 + $0xf8] sm:$0xff] %v277
      %s310 = smul.u32 32, %s14
      %p311 = scmp.lt.s32.totalorder %s310, 63
      %s312 = scalar_select %p311, %s310, 63
      %s313 = smul.addr %s312, 8
      %s314 = scalar_lea.vmem %s3, %s313
      // Predicated region
      $region33: #{conv_block.3} parent=31 // pred_check
        %p315 = pneg %p100
      $region34: #{conv_block.3} parent=31 // pred_check_branch
        %317 = sbr.rel (%p315) target = $region36
      $region35: #{conv_block.3} parent=31 // pred_region
        %s318 = smul.u32 32, %s14
      $region36: #{conv_block.3} parent=31 // pred_fallthru
        _
    $region32: #{conv_block.3} parent=5 // pred_fallthru
      _
    %p319 = scmp.le.s32.totalorder 2, %s9
    // Predicated region
    $region37: #{conv_block.3} parent=5 // pred_check
      %p320 = pneg %p319
    $region38: #{conv_block.3} parent=5 // pred_check_branch
      %322 = sbr.rel (%p320) target = $region40
    $region39: #{conv_block.3} parent=5 // pred_region
      %s323 = ssub.s32 %s9, 2
      // Predicated region
      $region41: #{conv_block.3} parent=39 // pred_check
        %p324 = pneg %p106
      $region42: #{conv_block.3} parent=39 // pred_check_branch
        %326 = sbr.rel (%p324) target = $region44
      $region43: #{conv_block.3} parent=39 // pred_region
        %s327 = smul.u32 32, %s15
        %p328 = scmp.lt.s32.totalorder %s327, 63
        %s329 = scalar_select %p328, %s327, 63
        %s330 = smul.addr %s329, 8
        %s331 = scalar_lea.vmem %s3, %s330
      $region44: #{conv_block.3} parent=39 // pred_fallthru
        _
    $region40: #{conv_block.3} parent=5 // pred_fallthru
      _
  $region6: #{conv_block.3} parent=0 // loop_footer
    %s13 = sadd.s32 1, %s9
  $region7: #{conv_block.3} parent=0 // loop_footer_branch
    %8 = sbr.rel target = $region3
  $region8: #{conv_block.3} parent=0 // loop_exit
    _

// kernel: conv_block.2
$region0: #{conv_block.2}
  #allocation0 [shape = 'u32[]', space=smem, size = 0x4, offset = 0x4, fixed_abs, tag = 'smem constant byte address 0x4 - core index']
  #allocation1 [shape = 'u32[72,128]{1,0:T(1,128)}', space=vmem, size = 0x9000, scoped, tag = 'internal scratch']
  %s0 = inlined_call_operand.vmem [shape: bf16[512,36], index: 0, kind: input, shape index: {}]
  %s1 = inlined_call_operand.vmem [shape: bf16[36,128], index: 1, kind: input, shape index: {}]
  %s2 = inlined_call_operand.vmem [shape: f32[1,128], index: 2, kind: input, shape index: {}]
  %s3 = inlined_call_operand.vmem [shape: f32[512,128], index: 3, kind: output, shape index: {0}]
  %s4 = inlined_call_operand.vmem [shape: f32[2,2,128], index: 4, kind: output, shape index: {1}]
  %5 = xla_tuple %s3, %s4
  %s6 = sld [smem:[#allocation0]]
  $region53: #{conv_block.2} parent=0
    _
  %s8 = ssub.s32 1, %s6
  %s9 = scalar_select 0, %s8, %s6
  loop: start=0, step=1, limit=4
  $region2: #{conv_block.2} parent=0 // loop_pre_header
    _
  $region3: #{conv_block.2} parent=0 // loop_header
    %s11 = sphi 0, %s15
    %p12 = scmp.ge.s32.totalorder %s11, 4
    %s21 = sphi 0, %s23
    %s24 = sphi 0, %s21
    %s25 = sphi 0, %s24
    %s41 = sphi 0, %s25
    %s45 = sphi 0, %s45
    %s47 = sphi 0, %s45
    %s48 = sphi 0, %s47
    %s62 = sphi 0, %s48
    %s66 = sphi 0, %s66
    %s68 = sphi 0, %s66
    %s69 = sphi 0, %s68
    %s83 = sphi 0, %s69
    %s89 = sphi 0, %s91
    %s92 = sphi 0, %s89
    %s93 = sphi 0, %s92
    %s109 = sphi 0, %s93
    %s115 = sphi 0, %s117
    %s118 = sphi 0, %s115
    %s119 = sphi 0, %s118
    %s135 = sphi 0, %s119
  $region4: #{conv_block.2} parent=0 // loop_header_branch
    %14 = sbr.rel (%p12) target = $region8
  $region5: #{conv_block.2} parent=0 // loop_body
    %s16 = ssub.s32 %s11, 1
    %s17 = ssub.s32 %s11, 2
    %s18 = sadd.s32 %s11, 1
    %s19 = ssub.s32 %s11, %s18
    %p20 = scmp.eq.s32.totalorder %s19, 0
    %s22 = sadd.s32 %s21, 1
    %s23 = scalar_select %p20, %s21, %s22
    %p26 = pneg %p20
    %p27 = scmp.eq.s32.totalorder %s11, 1
    %p28 = por %p26, %p27
    %p29 = scmp.ne.s32.totalorder %s21, %s24
    %p30 = scmp.eq.s32.totalorder %s11, 0
    %p31 = por %p29, %p30
    %p32 = scmp.ne.s32.totalorder %s21, %s24
    %p33 = scmp.eq.s32.totalorder %s16, 1
    %p34 = por %p32, %p33
    %p35 = scmp.ne.s32.totalorder %s24, %s25
    %p36 = scmp.eq.s32.totalorder %s16, 0
    %p37 = por %p35, %p36
    %p38 = scmp.ne.s32.totalorder %s24, %s25
    %p39 = scmp.eq.s32.totalorder %s17, 1
    %p40 = por %p38, %p39
    %p42 = scmp.ne.s32.totalorder %s25, %s41
    %p43 = scmp.eq.s32.totalorder %s17, 0
    %p44 = por %p42, %p43
    %s46 = sadd.s32 %s45, 1
    %p49 = scmp.eq.s32.totalorder %s11, 1
    %p50 = scmp.ne.s32.totalorder %s45, %s47
    %p51 = scmp.eq.s32.totalorder %s11, 0
    %p52 = por %p50, %p51
    %p53 = scmp.ne.s32.totalorder %s45, %s47
    %p54 = scmp.eq.s32.totalorder %s16, 1
    %p55 = por %p53, %p54
    %p56 = scmp.ne.s32.totalorder %s47, %s48
    %p57 = scmp.eq.s32.totalorder %s16, 0
    %p58 = por %p56, %p57
    %p59 = scmp.ne.s32.totalorder %s47, %s48
    %p60 = scmp.eq.s32.totalorder %s17, 1
    %p61 = por %p59, %p60
    %p63 = scmp.ne.s32.totalorder %s48, %s62
    %p64 = scmp.eq.s32.totalorder %s17, 0
    %p65 = por %p63, %p64
    %s67 = sadd.s32 %s66, 1
    %p70 = scmp.eq.s32.totalorder %s11, 1
    %p71 = scmp.ne.s32.totalorder %s66, %s68
    %p72 = scmp.eq.s32.totalorder %s11, 0
    %p73 = por %p71, %p72
    %p74 = scmp.ne.s32.totalorder %s66, %s68
    %p75 = scmp.eq.s32.totalorder %s16, 1
    %p76 = por %p74, %p75
    %p77 = scmp.ne.s32.totalorder %s68, %s69
    %p78 = scmp.eq.s32.totalorder %s16, 0
    %p79 = por %p77, %p78
    %p80 = scmp.ne.s32.totalorder %s68, %s69
    %p81 = scmp.eq.s32.totalorder %s17, 1
    %p82 = por %p80, %p81
    %p84 = scmp.ne.s32.totalorder %s69, %s83
    %p85 = scmp.eq.s32.totalorder %s17, 0
    %p86 = por %p84, %p85
    %s87 = ssub.s32 %s11, %s18
    %p88 = scmp.eq.s32.totalorder %s87, 0
    %s90 = sadd.s32 %s89, 1
    %s91 = scalar_select %p88, %s89, %s90
    %p94 = pneg %p88
    %p95 = scmp.eq.s32.totalorder %s11, 1
    %p96 = por %p94, %p95
    %p97 = scmp.ne.s32.totalorder %s89, %s92
    %p98 = scmp.eq.s32.totalorder %s11, 0
    %p99 = por %p97, %p98
    %p100 = scmp.ne.s32.totalorder %s89, %s92
    %p101 = scmp.eq.s32.totalorder %s16, 1
    %p102 = por %p100, %p101
    %p103 = scmp.ne.s32.totalorder %s92, %s93
    %p104 = scmp.eq.s32.totalorder %s16, 0
    %p105 = por %p103, %p104
    %p106 = scmp.ne.s32.totalorder %s92, %s93
    %p107 = scmp.eq.s32.totalorder %s17, 1
    %p108 = por %p106, %p107
    %p110 = scmp.ne.s32.totalorder %s93, %s109
    %p111 = scmp.eq.s32.totalorder %s17, 0
    %p112 = por %p110, %p111
    %s113 = ssub.s32 %s11, %s18
    %p114 = scmp.eq.s32.totalorder %s113, 0
    %s116 = sadd.s32 %s115, 1
    %s117 = scalar_select %p114, %s115, %s116
    %p120 = pneg %p114
    %p121 = scmp.eq.s32.totalorder %s11, 1
    %p122 = por %p120, %p121
    %p123 = scmp.ne.s32.totalorder %s115, %s118
    %p124 = scmp.eq.s32.totalorder %s11, 0
    %p125 = por %p123, %p124
    %p126 = scmp.ne.s32.totalorder %s115, %s118
    %p127 = scmp.eq.s32.totalorder %s16, 1
    %p128 = por %p126, %p127
    %p129 = scmp.ne.s32.totalorder %s118, %s119
    %p130 = scmp.eq.s32.totalorder %s16, 0
    %p131 = por %p129, %p130
    %p132 = scmp.ne.s32.totalorder %s118, %s119
    %p133 = scmp.eq.s32.totalorder %s17, 1
    %p134 = por %p132, %p133
    %p136 = scmp.ne.s32.totalorder %s119, %s135
    %p137 = scmp.eq.s32.totalorder %s17, 0
    %p138 = por %p136, %p137
    %p139 = scmp.le.s32.totalorder 1, %s11
    %p140 = scmp.lt.s32.totalorder %s11, 3
    %p141 = pnand %p139, %p140
    %p142 = pneg %p141
    // Predicated region
    $region9: #{conv_block.2} parent=5 // pred_check
      _
    $region10: #{conv_block.2} parent=5 // pred_check_branch
      %144 = sbr.rel (%p141) target = $region12
    $region11: #{conv_block.2} parent=5 // pred_region
      %s145 = ssub.s32 %s11, 1
      // Predicated region
      $region13: #{conv_block.2} parent=11 // pred_check
        %p146 = pneg %p58
      $region14: #{conv_block.2} parent=11 // pred_check_branch
        %148 = sbr.rel (%p146) target = $region16
      $region15: #{conv_block.2} parent=11 // pred_region
        _
      $region16: #{conv_block.2} parent=11 // pred_fallthru
        _
      // Predicated region
      $region17: #{conv_block.2} parent=11 // pred_check
        %p149 = pneg %p79
      $region18: #{conv_block.2} parent=11 // pred_check_branch
        %151 = sbr.rel (%p149) target = $region20
      $region19: #{conv_block.2} parent=11 // pred_region
        _
      $region20: #{conv_block.2} parent=11 // pred_fallthru
        _
    $region12: #{conv_block.2} parent=5 // pred_fallthru
      _
    %p152 = scmp.lt.s32.totalorder %s11, 2
    // Predicated region
    $region21: #{conv_block.2} parent=5 // pred_check
      %p153 = pneg %p152
    $region22: #{conv_block.2} parent=5 // pred_check_branch
      %155 = sbr.rel (%p153) target = $region24
    $region23: #{conv_block.2} parent=5 // pred_region
      // Predicated region
      $region25: #{conv_block.2} parent=23 // pred_check
        %p156 = pneg %p31
      $region26: #{conv_block.2} parent=23 // pred_check_branch
        %158 = sbr.rel (%p156) target = $region28
      $region27: #{conv_block.2} parent=23 // pred_region
        %s159 = smul.u32 32, %s11
        %p160 = scmp.lt.s32.totalorder %s159, 63
        %s161 = scalar_select %p160, %s159, 63
        %s162 = smul.addr %s161, 4
        %s163 = scalar_lea.vmem %s0, %s162
        %s164 = smul.u32 32, %s11
      $region28: #{conv_block.2} parent=23 // pred_fallthru
        _
    $region24: #{conv_block.2} parent=5 // pred_fallthru
      _
    %p165 = scmp.le.s32.totalorder 1, %s11
    %p166 = scmp.lt.s32.totalorder %s11, 3
    %p167 = pnand %p165, %p166
    %p168 = pneg %p167
    // Predicated region
    $region29: #{conv_block.2} parent=5 // pred_check
      _
    $region30: #{conv_block.2} parent=5 // pred_check_branch
      %170 = sbr.rel (%p167) target = $region32
    $region31: #{conv_block.2} parent=5 // pred_region
      %s171 = ssub.s32 %s11, 1
      %s172 = smul.u32 32, %s16
      %p173 = scmp.lt.s32.totalorder %s172, 63
      %s174 = scalar_select %p173, %s172, 63
      %s175 = smul.addr %s174, 4
      %s176 = scalar_lea.vmem %s0, %s175
      %p177 = pneg %p37
      %p178 = pneg %p34
      %p179 = pneg %p58
      %p180 = pneg %p55
      %p181 = pneg %p79
      %p182 = pneg %p76
      %p183 = pneg %p105
      %p184 = pneg %p102
      %s185 = smul.u32 32, %s16
      %p186 = scmp.lt.s32.totalorder %s185, 63
      %s187 = scalar_select %p186, %s185, 63
      %s188 = smul.addr %s187, 8
      %s189 = scalar_lea.vmem %s3, %s188
      %p190 = pneg %p131
      %p191 = pneg %p128
      %p192 = scmp.lt.s32.totalorder %s16, 1
      %s193 = scalar_select %p192, %s16, 1
      %s194 = smul.addr %s193, 2
      %s195 = scalar_lea.vmem %s4, %s194
      %s196 = smul.u32 32, %s16
      %p197 = scmp.lt.s32.totalorder %s196, 63
      %s198 = scalar_select %p197, %s196, 63
      %s199 = smul.addr %s198, 4
      %s200 = scalar_lea.vmem %s0, %s199
      %s201 = smul.u32 32, %s16
      %s202 = smul.u32 32, %s16
      %p203 = scmp.lt.s32.totalorder %s202, 63
      %s204 = scalar_select %p203, %s202, 63
      %s205 = smul.addr %s204, 8
      %s206 = scalar_lea.vmem %s3, %s205
      %s207 = smul.u32 32, %s16
      %p208 = scmp.lt.s32.totalorder %s16, 1
      %s209 = scalar_select %p208, %s16, 1
      %s210 = smul.addr %s209, 2
      %s211 = scalar_lea.vmem %s4, %s210
      %v213 = vld [vmem:[%s200] sm:$0xf]
      %v214 = vld [vmem:[%s200 + $0x4] sm:$0xf]
      %v215 = vld [vmem:[%s200 + $0x8] sm:$0xf]
      %v216 = vld [vmem:[%s200 + $0xc] sm:$0xf]
      %v217 = vld [vmem:[%s200 + $0x10] sm:$0xf]
      %v218 = vld [vmem:[%s200 + $0x14] sm:$0xf]
      %v219 = vld [vmem:[%s200 + $0x18] sm:$0xf]
      %v220 = vld [vmem:[%s200 + $0x1c] sm:$0xf]
      %v221 = vld [vmem:[%s200 + $0x20] sm:$0xf]
      %v222 = vld [vmem:[%s200 + $0x24] sm:$0xf]
      %v223 = vld [vmem:[%s200 + $0x28] sm:$0xf]
      %v224 = vld [vmem:[%s200 + $0x2c] sm:$0xf]
      %v225 = vld [vmem:[%s200 + $0x30] sm:$0xf]
      %v226 = vld [vmem:[%s200 + $0x34] sm:$0xf]
      %v227 = vld [vmem:[%s200 + $0x38] sm:$0xf]
      %v228 = vld [vmem:[%s200 + $0x3c] sm:$0xf]
      %v229 = vld [vmem:[%s200 + $0x40] sm:$0xf]
      %v230 = vld [vmem:[%s200 + $0x44] sm:$0xf]
      %v231 = vld [vmem:[%s200 + $0x48] sm:$0xf]
      %v232 = vld [vmem:[%s200 + $0x4c] sm:$0xf]
      %v233 = vld [vmem:[%s200 + $0x50] sm:$0xf]
      %v234 = vld [vmem:[%s200 + $0x54] sm:$0xf]
      %v235 = vld [vmem:[%s200 + $0x58] sm:$0xf]
      %v236 = vld [vmem:[%s200 + $0x5c] sm:$0xf]
      %v237 = vld [vmem:[%s200 + $0x60] sm:$0xf]
      %v238 = vld [vmem:[%s200 + $0x64] sm:$0xf]
      %v239 = vld [vmem:[%s200 + $0x68] sm:$0xf]
      %v240 = vld [vmem:[%s200 + $0x6c] sm:$0xf]
      %v241 = vld [vmem:[%s200 + $0x70] sm:$0xf]
      %v242 = vld [vmem:[%s200 + $0x74] sm:$0xf]
      %v243 = vld [vmem:[%s200 + $0x78] sm:$0xf]
      %v244 = vld [vmem:[%s200 + $0x7c] sm:$0xf]
      %v245 = vld [vmem:[%s1] sm:$0xf]
      %v246 = vld [vmem:[%s1 + $0x4] sm:$0xf]
      %v247 = vld [vmem:[%s1 + $0x8] sm:$0xf]
      %v248 = vld [vmem:[%s1 + $0xc] sm:$0xf]
      %v249 = vld [vmem:[%s1 + $0x10] sm:$0x3]
      %v250 = vld [vmem:[%s2] sm:$0x1]
      %v252 = vperm.slane %v250, 0
      %v286 = vunpack.c.l.b16 %v213
      %v287 = vunpack.c.l.b16 %v214
      %v288 = vunpack.c.l.b16 %v215
      %v289 = vunpack.c.l.b16 %v216
      %v290 = vunpack.c.l.b16 %v217
      %v291 = vunpack.c.l.b16 %v218
      %v292 = vunpack.c.l.b16 %v219
      %v293 = vunpack.c.l.b16 %v220
      %v294 = vunpack.c.l.b16 %v221
      %v295 = vunpack.c.l.b16 %v222
      %v296 = vunpack.c.l.b16 %v223
      %v297 = vunpack.c.l.b16 %v224
      %v298 = vunpack.c.l.b16 %v225
      %v299 = vunpack.c.l.b16 %v226
      %v300 = vunpack.c.l.b16 %v227
      %v301 = vunpack.c.l.b16 %v228
      %v302 = vunpack.c.l.b16 %v229
      %v303 = vunpack.c.l.b16 %v230
      %v304 = vunpack.c.l.b16 %v231
      %v305 = vunpack.c.l.b16 %v232
      %v306 = vunpack.c.l.b16 %v233
      %v307 = vunpack.c.l.b16 %v234
      %v308 = vunpack.c.l.b16 %v235
      %v309 = vunpack.c.l.b16 %v236
      %v310 = vunpack.c.l.b16 %v237
      %v311 = vunpack.c.l.b16 %v238
      %v312 = vunpack.c.l.b16 %v239
      %v313 = vunpack.c.l.b16 %v240
      %v314 = vunpack.c.l.b16 %v241
      %v315 = vunpack.c.l.b16 %v242
      %v316 = vunpack.c.l.b16 %v243
      %v317 = vunpack.c.l.b16 %v244
      %v318 = vpack.c.b16 %v287, %v286
      %v319 = vpack.c.b16 %v289, %v288
      %v320 = vpack.c.b16 %v291, %v290
      %v321 = vpack.c.b16 %v293, %v292
      %v322 = vpack.c.b16 %v295, %v294
      %v323 = vpack.c.b16 %v297, %v296
      %v324 = vpack.c.b16 %v299, %v298
      %v325 = vpack.c.b16 %v301, %v300
      %v326 = vpack.c.b16 %v303, %v302
      %v327 = vpack.c.b16 %v305, %v304
      %v328 = vpack.c.b16 %v307, %v306
      %v329 = vpack.c.b16 %v309, %v308
      %v330 = vpack.c.b16 %v311, %v310
      %v331 = vpack.c.b16 %v313, %v312
      %v332 = vpack.c.b16 %v315, %v314
      %v333 = vpack.c.b16 %v317, %v316
      %v339 = vunpack.c.l.b16 %v245
      %v340 = vunpack.c.l.b16 %v246
      %v341 = vunpack.c.l.b16 %v247
      %v342 = vunpack.c.l.b16 %v248
      %v343 = vunpack.c.l.b16 %v249
      %v344 = vpack.c.b16 %v340, %v339
      %v345 = vpack.c.b16 %v342, %v341
      %v346 = vpack.c.b16 %v343, %v343
      %vm349 = vcmask 293888
      %v351 = vsel %vm349, %v318, 0
      %v354 = vsel %vm349, %v319, 0
      %v357 = vsel %vm349, %v320, 0
      %v360 = vsel %vm349, %v321, 0
      %v363 = vsel %vm349, %v322, 0
      %v366 = vsel %vm349, %v323, 0
      %v369 = vsel %vm349, %v324, 0
      %v372 = vsel %vm349, %v325, 0
      %v375 = vsel %vm349, %v326, 0
      %v378 = vsel %vm349, %v327, 0
      %v381 = vsel %vm349, %v328, 0
      %v384 = vsel %vm349, %v329, 0
      %v387 = vsel %vm349, %v330, 0
      %v390 = vsel %vm349, %v331, 0
      %v393 = vsel %vm349, %v332, 0
      %v396 = vsel %vm349, %v333, 0
      %vm398 = vcmask 1041408
      %v400 = vsel %vm398, %v346, 0
      %402 = vmatpush.bf16.msra.mxu0 0
      %403 = vmatpush.bf16.msra.mxu0 0
      %404 = vmatpush.bf16.msra.mxu0 0
      %405 = vmatpush.bf16.msra.mxu0 0
      %406 = vmatpush.bf16.msra.mxu0 0
      %407 = vmatpush.bf16.msra.mxu0 %v400
      %408 = vmatpush.bf16.msra.mxu0 %v345
      %409 = vmatpush.bf16.msra.mxu0 %v344
      %410 = vmatmul.bf16.gmra.mxu0 %v351
      %v411 = vpop.f32.mrf.mxu0
      %v412 = vadd.f32 %v252, %v411
      %v413 = vpop.f32.mrf.mxu0
      %v414 = vadd.f32 %v252, %v413
      %415 = vmatmul.bf16.gmra.mxu0 %v354
      %v416 = vpop.f32.mrf.mxu0
      %v417 = vadd.f32 %v252, %v416
      %v418 = vpop.f32.mrf.mxu0
      %v419 = vadd.f32 %v252, %v418
      %420 = vmatmul.bf16.gmra.mxu0 %v357
      %v421 = vpop.f32.mrf.mxu0
      %v422 = vadd.f32 %v252, %v421
      %v423 = vpop.f32.mrf.mxu0
      %v424 = vadd.f32 %v252, %v423
      %425 = vmatmul.bf16.gmra.mxu0 %v360
      %v426 = vpop.f32.mrf.mxu0
      %v427 = vadd.f32 %v252, %v426
      %v428 = vpop.f32.mrf.mxu0
      %v429 = vadd.f32 %v252, %v428
      %430 = vmatmul.bf16.gmra.mxu0 %v363
      %v431 = vpop.f32.mrf.mxu0
      %v432 = vadd.f32 %v252, %v431
      %v433 = vpop.f32.mrf.mxu0
      %v434 = vadd.f32 %v252, %v433
      %435 = vmatmul.bf16.gmra.mxu0 %v366
      %v436 = vpop.f32.mrf.mxu0
      %v437 = vadd.f32 %v252, %v436
      %v438 = vpop.f32.mrf.mxu0
      %v439 = vadd.f32 %v252, %v438
      %440 = vmatmul.bf16.gmra.mxu0 %v369
      %v441 = vpop.f32.mrf.mxu0
      %v442 = vadd.f32 %v252, %v441
      %v443 = vpop.f32.mrf.mxu0
      %v444 = vadd.f32 %v252, %v443
      %445 = vmatmul.bf16.gmra.mxu0 %v372
      %v446 = vpop.f32.mrf.mxu0
      %v447 = vadd.f32 %v252, %v446
      %v448 = vpop.f32.mrf.mxu0
      %v449 = vadd.f32 %v252, %v448
      %450 = vmatmul.bf16.gmra.mxu0 %v375
      %v451 = vpop.f32.mrf.mxu0
      %v452 = vadd.f32 %v252, %v451
      %v453 = vpop.f32.mrf.mxu0
      %v454 = vadd.f32 %v252, %v453
      %455 = vmatmul.bf16.gmra.mxu0 %v378
      %v456 = vpop.f32.mrf.mxu0
      %v457 = vadd.f32 %v252, %v456
      %v458 = vpop.f32.mrf.mxu0
      %v459 = vadd.f32 %v252, %v458
      %460 = vmatmul.bf16.gmra.mxu0 %v381
      %v461 = vpop.f32.mrf.mxu0
      %v462 = vadd.f32 %v252, %v461
      %v463 = vpop.f32.mrf.mxu0
      %v464 = vadd.f32 %v252, %v463
      %465 = vmatmul.bf16.gmra.mxu0 %v384
      %v466 = vpop.f32.mrf.mxu0
      %v467 = vadd.f32 %v252, %v466
      %v468 = vpop.f32.mrf.mxu0
      %v469 = vadd.f32 %v252, %v468
      %470 = vmatmul.bf16.gmra.mxu0 %v387
      %v471 = vpop.f32.mrf.mxu0
      %v472 = vadd.f32 %v252, %v471
      %v473 = vpop.f32.mrf.mxu0
      %v474 = vadd.f32 %v252, %v473
      %475 = vmatmul.bf16.gmra.mxu0 %v390
      %v476 = vpop.f32.mrf.mxu0
      %v477 = vadd.f32 %v252, %v476
      %v478 = vpop.f32.mrf.mxu0
      %v479 = vadd.f32 %v252, %v478
      %480 = vmatmul.bf16.gmra.mxu0 %v393
      %v481 = vpop.f32.mrf.mxu0
      %v482 = vadd.f32 %v252, %v481
      %v483 = vpop.f32.mrf.mxu0
      %v484 = vadd.f32 %v252, %v483
      %485 = vmatmul.bf16.gmra.mxu0 %v396
      %v486 = vpop.f32.mrf.mxu0
      %v487 = vadd.f32 %v252, %v486
      %v488 = vpop.f32.mrf.mxu0
      %v489 = vadd.f32 %v252, %v488
      %490 = vdwg.mxu0
      %v491 = vmax.f32 %v412, 0.0
      %v492 = vmax.f32 %v414, 0.0
      %v493 = vmax.f32 %v417, 0.0
      %v494 = vmax.f32 %v419, 0.0
      %v495 = vmax.f32 %v422, 0.0
      %v496 = vmax.f32 %v424, 0.0
      %v497 = vmax.f32 %v427, 0.0
      %v498 = vmax.f32 %v429, 0.0
      %v499 = vmax.f32 %v432, 0.0
      %v500 = vmax.f32 %v434, 0.0
      %v501 = vmax.f32 %v437, 0.0
      %v502 = vmax.f32 %v439, 0.0
      %v503 = vmax.f32 %v442, 0.0
      %v504 = vmax.f32 %v444, 0.0
      %v505 = vmax.f32 %v447, 0.0
      %v506 = vmax.f32 %v449, 0.0
      %v507 = vmax.f32 %v452, 0.0
      %v508 = vmax.f32 %v454, 0.0
      %v509 = vmax.f32 %v457, 0.0
      %v510 = vmax.f32 %v459, 0.0
      %v511 = vmax.f32 %v462, 0.0
      %v512 = vmax.f32 %v464, 0.0
      %v513 = vmax.f32 %v467, 0.0
      %v514 = vmax.f32 %v469, 0.0
      %v515 = vmax.f32 %v472, 0.0
      %v516 = vmax.f32 %v474, 0.0
      %v517 = vmax.f32 %v477, 0.0
      %v518 = vmax.f32 %v479, 0.0
      %v519 = vmax.f32 %v482, 0.0
      %v520 = vmax.f32 %v484, 0.0
      %v521 = vmax.f32 %v487, 0.0
      %v522 = vmax.f32 %v489, 0.0
      %523 = vst [vmem:[%s206] sm:$0xff] %v491
      %524 = vst [vmem:[%s206 + $0x8] sm:$0xff] %v492
      %525 = vst [vmem:[%s206 + $0x10] sm:$0xff] %v493
      %526 = vst [vmem:[%s206 + $0x18] sm:$0xff] %v494
      %527 = vst [vmem:[%s206 + $0x20] sm:$0xff] %v495
      %528 = vst [vmem:[%s206 + $0x28] sm:$0xff] %v496
      %529 = vst [vmem:[%s206 + $0x30] sm:$0xff] %v497
      %530 = vst [vmem:[%s206 + $0x38] sm:$0xff] %v498
      %531 = vst [vmem:[%s206 + $0x40] sm:$0xff] %v499
      %532 = vst [vmem:[%s206 + $0x48] sm:$0xff] %v500
      %533 = vst [vmem:[%s206 + $0x50] sm:$0xff] %v501
      %534 = vst [vmem:[%s206 + $0x58] sm:$0xff] %v502
      %535 = vst [vmem:[%s206 + $0x60] sm:$0xff] %v503
      %536 = vst [vmem:[%s206 + $0x68] sm:$0xff] %v504
      %537 = vst [vmem:[%s206 + $0x70] sm:$0xff] %v505
      %538 = vst [vmem:[%s206 + $0x78] sm:$0xff] %v506
      %539 = vst [vmem:[%s206 + $0x80] sm:$0xff] %v507
      %540 = vst [vmem:[%s206 + $0x88] sm:$0xff] %v508
      %541 = vst [vmem:[%s206 + $0x90] sm:$0xff] %v509
      %542 = vst [vmem:[%s206 + $0x98] sm:$0xff] %v510
      %543 = vst [vmem:[%s206 + $0xa0] sm:$0xff] %v511
      %544 = vst [vmem:[%s206 + $0xa8] sm:$0xff] %v512
      %545 = vst [vmem:[%s206 + $0xb0] sm:$0xff] %v513
      %546 = vst [vmem:[%s206 + $0xb8] sm:$0xff] %v514
      %547 = vst [vmem:[%s206 + $0xc0] sm:$0xff] %v515
      %548 = vst [vmem:[%s206 + $0xc8] sm:$0xff] %v516
      %549 = vst [vmem:[%s206 + $0xd0] sm:$0xff] %v517
      %550 = vst [vmem:[%s206 + $0xd8] sm:$0xff] %v518
      %551 = vst [vmem:[%s206 + $0xe0] sm:$0xff] %v519
      %552 = vst [vmem:[%s206 + $0xe8] sm:$0xff] %v520
      %553 = vst [vmem:[%s206 + $0xf0] sm:$0xff] %v521
      %554 = vst [vmem:[%s206 + $0xf8] sm:$0xff] %v522
      %v555 = vadd.f32 %v491, %v492
      %v556 = vadd.f32 %v555, %v493
      %v557 = vadd.f32 %v556, %v494
      %v558 = vadd.f32 %v557, %v495
      %v559 = vadd.f32 %v558, %v496
      %v560 = vadd.f32 %v559, %v497
      %v561 = vadd.f32 %v560, %v498
      %v562 = vadd.f32 %v561, %v499
      %v563 = vadd.f32 %v562, %v500
      %v564 = vadd.f32 %v563, %v501
      %v565 = vadd.f32 %v564, %v502
      %v566 = vadd.f32 %v565, %v503
      %v567 = vadd.f32 %v566, %v504
      %v568 = vadd.f32 %v567, %v505
      %v569 = vadd.f32 %v568, %v506
      %v570 = vadd.f32 %v569, %v507
      %v571 = vadd.f32 %v570, %v508
      %v572 = vadd.f32 %v571, %v509
      %v573 = vadd.f32 %v572, %v510
      %v574 = vadd.f32 %v573, %v511
      %v575 = vadd.f32 %v574, %v512
      %v576 = vadd.f32 %v575, %v513
      %v577 = vadd.f32 %v576, %v514
      %v578 = vadd.f32 %v577, %v515
      %v579 = vadd.f32 %v578, %v516
      %v580 = vadd.f32 %v579, %v517
      %v581 = vadd.f32 %v580, %v518
      %v582 = vadd.f32 %v581, %v519
      %v583 = vadd.f32 %v582, %v520
      %v584 = vadd.f32 %v583, %v521
      %v585 = vadd.f32 %v584, %v522
      %v586 = vrot.slane %v585, 4
      %v587 = vadd.f32 %v585, %v586
      %v588 = vrot.slane %v587, 2
      %v589 = vadd.f32 %v587, %v588
      %v590 = vrot.slane %v589, 1
      %v591 = vadd.f32 %v589, %v590
      %v592 = vmul.f32 %v491, %v491
      %v593 = vmul.f32 %v492, %v492
      %v594 = vmul.f32 %v493, %v493
      %v595 = vmul.f32 %v494, %v494
      %v596 = vmul.f32 %v495, %v495
      %v597 = vmul.f32 %v496, %v496
      %v598 = vmul.f32 %v497, %v497
      %v599 = vmul.f32 %v498, %v498
      %v600 = vmul.f32 %v499, %v499
      %v601 = vmul.f32 %v500, %v500
      %v602 = vmul.f32 %v501, %v501
      %v603 = vmul.f32 %v502, %v502
      %v604 = vmul.f32 %v503, %v503
      %v605 = vmul.f32 %v504, %v504
      %v606 = vmul.f32 %v505, %v505
      %v607 = vmul.f32 %v506, %v506
      %v608 = vmul.f32 %v507, %v507
      %v609 = vmul.f32 %v508, %v508
      %v610 = vmul.f32 %v509, %v509
      %v611 = vmul.f32 %v510, %v510
      %v612 = vmul.f32 %v511, %v511
      %v613 = vmul.f32 %v512, %v512
      %v614 = vmul.f32 %v513, %v513
      %v615 = vmul.f32 %v514, %v514
      %v616 = vmul.f32 %v515, %v515
      %v617 = vmul.f32 %v516, %v516
      %v618 = vmul.f32 %v517, %v517
      %v619 = vmul.f32 %v518, %v518
      %v620 = vmul.f32 %v519, %v519
      %v621 = vmul.f32 %v520, %v520
      %v622 = vmul.f32 %v521, %v521
      %v623 = vmul.f32 %v522, %v522
      %v624 = vadd.f32 %v592, %v593
      %v625 = vadd.f32 %v624, %v594
      %v626 = vadd.f32 %v625, %v595
      %v627 = vadd.f32 %v626, %v596
      %v628 = vadd.f32 %v627, %v597
      %v629 = vadd.f32 %v628, %v598
      %v630 = vadd.f32 %v629, %v599
      %v631 = vadd.f32 %v630, %v600
      %v632 = vadd.f32 %v631, %v601
      %v633 = vadd.f32 %v632, %v602
      %v634 = vadd.f32 %v633, %v603
      %v635 = vadd.f32 %v634, %v604
      %v636 = vadd.f32 %v635, %v605
      %v637 = vadd.f32 %v636, %v606
      %v638 = vadd.f32 %v637, %v607
      %v639 = vadd.f32 %v638, %v608
      %v640 = vadd.f32 %v639, %v609
      %v641 = vadd.f32 %v640, %v610
      %v642 = vadd.f32 %v641, %v611
      %v643 = vadd.f32 %v642, %v612
      %v644 = vadd.f32 %v643, %v613
      %v645 = vadd.f32 %v644, %v614
      %v646 = vadd.f32 %v645, %v615
      %v647 = vadd.f32 %v646, %v616
      %v648 = vadd.f32 %v647, %v617
      %v649 = vadd.f32 %v648, %v618
      %v650 = vadd.f32 %v649, %v619
      %v651 = vadd.f32 %v650, %v620
      %v652 = vadd.f32 %v651, %v621
      %v653 = vadd.f32 %v652, %v622
      %v654 = vadd.f32 %v653, %v623
      %v655 = vrot.slane %v654, 4
      %v656 = vadd.f32 %v654, %v655
      %v657 = vrot.slane %v656, 2
      %v658 = vadd.f32 %v656, %v657
      %v659 = vrot.slane %v658, 1
      %v660 = vadd.f32 %v658, %v659
      %vm661 = vcmask 1040384
      %v662 = vsel %vm661, %v591, %v660
      %663 = vst [vmem:[%s211] sm:$0x3] %v662
      %s664 = smul.u32 32, %s16
      %p665 = scmp.lt.s32.totalorder %s664, 63
      %s666 = scalar_select %p665, %s664, 63
      %s667 = smul.addr %s666, 8
      %s668 = scalar_lea.vmem %s3, %s667
      %p669 = scmp.lt.s32.totalorder %s16, 1
      %s670 = scalar_select %p669, %s16, 1
      %s671 = smul.addr %s670, 2
      %s672 = scalar_lea.vmem %s4, %s671
      // Predicated region
      $region33: #{conv_block.2} parent=31 // pred_check
        %p673 = pneg %p102
      $region34: #{conv_block.2} parent=31 // pred_check_branch
        %675 = sbr.rel (%p673) target = $region36
      $region35: #{conv_block.2} parent=31 // pred_region
        %s676 = smul.u32 32, %s16
      $region36: #{conv_block.2} parent=31 // pred_fallthru
        _
      // Predicated region
      $region37: #{conv_block.2} parent=31 // pred_check
        %p677 = pneg %p128
      $region38: #{conv_block.2} parent=31 // pred_check_branch
        %679 = sbr.rel (%p677) target = $region40
      $region39: #{conv_block.2} parent=31 // pred_region
        _
      $region40: #{conv_block.2} parent=31 // pred_fallthru
        _
    $region32: #{conv_block.2} parent=5 // pred_fallthru
      _
    %p680 = scmp.le.s32.totalorder 2, %s11
    // Predicated region
    $region41: #{conv_block.2} parent=5 // pred_check
      %p681 = pneg %p680
    $region42: #{conv_block.2} parent=5 // pred_check_branch
      %683 = sbr.rel (%p681) target = $region44
    $region43: #{conv_block.2} parent=5 // pred_region
      %s684 = ssub.s32 %s11, 2
      // Predicated region
      $region45: #{conv_block.2} parent=43 // pred_check
        %p685 = pneg %p108
      $region46: #{conv_block.2} parent=43 // pred_check_branch
        %687 = sbr.rel (%p685) target = $region48
      $region47: #{conv_block.2} parent=43 // pred_region
        %s688 = smul.u32 32, %s17
        %p689 = scmp.lt.s32.totalorder %s688, 63
        %s690 = scalar_select %p689, %s688, 63
        %s691 = smul.addr %s690, 8
        %s692 = scalar_lea.vmem %s3, %s691
      $region48: #{conv_block.2} parent=43 // pred_fallthru
        _
      // Predicated region
      $region49: #{conv_block.2} parent=43 // pred_check
        %p693 = pneg %p134
      $region50: #{conv_block.2} parent=43 // pred_check_branch
        %695 = sbr.rel (%p693) target = $region52
      $region51: #{conv_block.2} parent=43 // pred_region
        %p696 = scmp.lt.s32.totalorder %s17, 1
        %s697 = scalar_select %p696, %s17, 1
        %s698 = smul.addr %s697, 2
        %s699 = scalar_lea.vmem %s4, %s698
      $region52: #{conv_block.2} parent=43 // pred_fallthru
        _
    $region44: #{conv_block.2} parent=5 // pred_fallthru
      _
  $region6: #{conv_block.2} parent=0 // loop_footer
    %s15 = sadd.s32 1, %s11
  $region7: #{conv_block.2} parent=0 // loop_footer_branch
    %10 = sbr.rel target = $region3
  $region8: #{conv_block.2} parent=0 // loop_exit
    _

</llo_original>
